<compile_context>
chip_gen: v7x
topology: tpu7x:2x2x1
jax: 0.10.0
libtpu: 0.0.40
codegen_flags: <defaults>
</compile_context>

<pallas_src>
import jax
import jax.numpy as jnp
from jax import lax
from jax.experimental import pallas as pl
from jax.experimental.pallas import tpu as pltpu

_LANE = 128
_SUBLANE = 8


def _cdiv(a, b):
    return (a + b - 1) // b


def _round_up(x, m):
    return _cdiv(x, m) * m


def _embedder_kernel(bag_ids_ref, tok_ref, table_ref, wt_ref, bias_ref, out_ref):
    """One grid step: `tb` bags -> (tb, Cp) logits, all on VPU/XLU/MXU (no scalar loops)."""
    tb, cp = out_ref.shape
    tp = bag_ids_ref.shape[1]
    vp = table_ref.shape[0]
    bag_base = pl.program_id(0) * tb

    # Bag-membership / mean-weight matrix, (tb, tp).
    bag_ids = bag_ids_ref[...]                                        # (1, tp) int32
    row_ids = lax.broadcasted_iota(jnp.int32, (tb, tp), 0) + bag_base
    member = (bag_ids == row_ids).astype(jnp.float32)                 # (tb, tp)
    lens = jnp.sum(member, axis=1, keepdims=True)                     # (tb, 1)  XLU reduce
    inv_len = pl.reciprocal(jnp.maximum(lens, 1.0), approx=True)      # EUP slot
    weights = member * inv_len                                        # empty/padded bag -> all-zero row

    # Token-id one-hot, (tp, vp); padded token slots hold -1 and match nothing.
    toks = tok_ref[...]                                               # (tp, 1) int32
    col_ids = lax.broadcasted_iota(jnp.int32, (tp, vp), 1)
    onehot = (toks == col_ids).astype(jnp.float32)                    # (tp, vp)

    # Mean-pooled bag embeddings, then the Linear -- all on the MXU.
    counts = jnp.dot(weights, onehot, preferred_element_type=jnp.float32)         # (tb, vp)
    pooled = jnp.dot(counts, table_ref[...], preferred_element_type=jnp.float32)  # (tb, E)
    logits = jnp.dot(pooled, wt_ref[...], preferred_element_type=jnp.float32)     # (tb, cp)

    # Empty / padded bags: pooled == 0, so their row is exactly `bias`
    # (matches the reference: zeros @ W^T + b).
    out_ref[...] = logits + bias_ref[...]


def tweet_classification_embedder(text, offsets, emb_table, fc_weight, fc_bias,
                                  *, bag_tile=128):
    """Pallas equivalent of fc(EmbeddingBag(mean)(text, offsets)) -> (B, C)."""
    text = text.astype(jnp.int32)
    offsets = offsets.astype(jnp.int32)
    T = int(text.shape[0])
    B = int(offsets.shape[0])
    V, E = emb_table.shape
    C = fc_weight.shape[0]

    tp = _round_up(max(T, 1), _LANE)      # token axis (lane dim of the weight matrix)
    vp = _round_up(V, _LANE)              # vocab axis (one-hot columns / table rows)
    cp = _round_up(C, _LANE)              # class axis (lane-dense output)

    # Bag tile: multiple of 8 sublanes, big enough to amortize ~0.35 us/step,
    # small enough that large batches give >= 2 grid steps (v7x megacore).
    tb = min(bag_tile, max(_SUBLANE, _round_up(_cdiv(B, 4), _SUBLANE)))
    b_pad = _round_up(B, tb)

    # Validate token ids once (vectorized) here instead of per-token in-kernel.
    # TODO(synk): torch raises on out-of-range ids; we clip instead.
    tok = jnp.clip(text, 0, V - 1)

    # Per-token bag id; the last bag extends to the end of `text`, as in torch.
    # Non-monotonic offsets degrade to empty bags instead of raising.
    positions = jnp.arange(T, dtype=jnp.int32)
    bag_ids = (jnp.searchsorted(offsets, positions, side="right") - 1).astype(jnp.int32)

    bag_row = jnp.full((1, tp), -1, jnp.int32).at[0, :T].set(bag_ids)   # pad -> no bag
    tok_col = jnp.full((tp, 1), -1, jnp.int32).at[:T, 0].set(tok)       # pad -> no vocab match
    table_p = jnp.zeros((vp, E), jnp.float32).at[:V, :].set(emb_table.astype(jnp.float32))
    wt_p = jnp.zeros((E, cp), jnp.float32).at[:, :C].set(fc_weight.astype(jnp.float32).T)
    bias_p = jnp.zeros((1, cp), jnp.float32).at[0, :C].set(fc_bias.astype(jnp.float32))

    # Explicit scoped-VMEM budget (v5e default is only 16 MiB): double-buffered
    # input/output blocks + in-kernel intermediates + headroom.
    block_bytes = 4 * (tp + tp + vp * E + E * cp + cp + tb * cp)
    interm_bytes = 4 * (tb * tp + tp * vp + tb * vp)
    vmem_limit = int(min(max(2 * block_bytes + interm_bytes + (2 << 20), 16 << 20), 48 << 20))

    out = pl.pallas_call(
        _embedder_kernel,
        out_shape=jax.ShapeDtypeStruct((b_pad, cp), jnp.float32),
        grid_spec=pltpu.PrefetchScalarGridSpec(
            num_scalar_prefetch=0,
            grid=(b_pad // tb,),
            in_specs=[
                pl.BlockSpec((1, tp), lambda g: (0, 0)),    # per-token bag ids
                pl.BlockSpec((tp, 1), lambda g: (0, 0)),    # token ids (column layout)
                pl.BlockSpec((vp, E), lambda g: (0, 0)),    # raw embedding table (not folded)
                pl.BlockSpec((E, cp), lambda g: (0, 0)),    # fc weight, transposed
                pl.BlockSpec((1, cp), lambda g: (0, 0)),    # fc bias
            ],
            out_specs=pl.BlockSpec((tb, cp), lambda g: (g, 0)),
        ),
        compiler_params=pltpu.CompilerParams(
            dimension_semantics=("parallel",),               # bag tiles are independent
            vmem_limit_bytes=vmem_limit,
        ),
    )(bag_row, tok_col, table_p, wt_p, bias_p)

    return out[:B, :C]


def _reference(text, offsets, emb_table, fc_weight, fc_bias):
    """Pure-JAX reference mirroring torch's EmbeddingBag(mean) + Linear."""
    T = text.shape[0]
    B = offsets.shape[0]
    ends = jnp.concatenate([offsets[1:], jnp.array([T], jnp.int32)])
    outs = []
    for b in range(B):
        s, e = int(offsets[b]), int(ends[b])
        if e > s:
            bag = emb_table[text[s:e]].mean(axis=0)
        else:
            bag = jnp.zeros((emb_table.shape[1],), jnp.float32)
        outs.append(bag)
    embedded = jnp.stack(outs)                       # (B, E)
    return embedded @ fc_weight.T + fc_bias          # (B, C)


if __name__ == "__main__":
    vocab_size, embed_dim, num_class = 64, 32, 4

    key = jax.random.PRNGKey(0)
    k_emb, k_fc, k_txt = jax.random.split(key, 3)

    # init_weights(): uniform(-0.5, 0.5) for embedding & fc weight, zero bias
    initrange = 0.5
    emb_table = jax.random.uniform(k_emb, (vocab_size, embed_dim),
                                   jnp.float32, -initrange, initrange)
    fc_weight = jax.random.uniform(k_fc, (num_class, embed_dim),
                                   jnp.float32, -initrange, initrange)
    fc_bias = jnp.zeros((num_class,), jnp.float32)

    # 4 bags of ragged lengths packed into one flat token stream
    text = jax.random.randint(k_txt, (20,), 0, vocab_size, jnp.int32)
    offsets = jnp.array([0, 5, 9, 14], jnp.int32)   # bag lens: 5, 4, 5, 6

    out = tweet_classification_embedder(text, offsets, emb_table, fc_weight, fc_bias)
    out = jax.block_until_ready(out)

    ref = _reference(text, offsets, emb_table, fc_weight, fc_bias)
    assert out.shape == (offsets.shape[0], num_class)
    # Tolerance covers the approximate EUP reciprocal (1/len) and the different
    # fp32 summation order (pool-via-matmul vs. gather-then-mean).
    assert jnp.allclose(out, ref, atol=2e-3, rtol=2e-3), (out, ref)

    print("KERNEL_OK")
</pallas_src>

<mosaic_0001>
module attributes {stable_mosaic.version = 11 : i64} {
  func.func @_embedder_kernel(%arg0: i32, %arg1: memref<1x128xi32, #tpu.memory_space<vmem>>, %arg2: memref<128x1xi32, #tpu.memory_space<vmem>>, %arg3: memref<128x32xf32, #tpu.memory_space<vmem>>, %arg4: memref<32x128xf32, #tpu.memory_space<vmem>>, %arg5: memref<1x128xf32, #tpu.memory_space<vmem>>, %arg6: memref<8x128xf32, #tpu.memory_space<vmem>>) attributes {dimension_semantics = [#tpu.dimension_semantics<parallel>], iteration_bounds = array<i64: 1>, scalar_prefetch = 0 : i64, scratch_operands = 0 : i64, tpu.core_type = #tpu.core_type<tc>, window_params = [{pipeline_mode = #tpu.pipeline_mode<synchronous>, transform_indices = @transform_0, window_bounds = array<i64: 1, 128>}, {pipeline_mode = #tpu.pipeline_mode<synchronous>, transform_indices = @transform_1, window_bounds = array<i64: 128, 1>}, {pipeline_mode = #tpu.pipeline_mode<synchronous>, transform_indices = @transform_2, window_bounds = array<i64: 128, 32>}, {pipeline_mode = #tpu.pipeline_mode<synchronous>, transform_indices = @transform_3, window_bounds = array<i64: 32, 128>}, {pipeline_mode = #tpu.pipeline_mode<synchronous>, transform_indices = @transform_4, window_bounds = array<i64: 1, 128>}, {transform_indices = @transform_5, window_bounds = array<i64: 8, 128>}]} {
    %c8_i32 = arith.constant 8 : i32
    %0 = arith.muli %arg0, %c8_i32 : i32
    %c0 = arith.constant 0 : index
    %c0_0 = arith.constant 0 : index
    %1 = vector.load %arg1[%c0, %c0_0] : memref<1x128xi32, #tpu.memory_space<vmem>>, vector<1x128xi32>
    %2 = tpu.iota {dimensions = array<i32: 0>} : vector<8x128xi32>
    %3 = vector.broadcast %0 : i32 to vector<8x128xi32>
    %4 = arith.addi %2, %3 : vector<8x128xi32>
    %5 = vector.broadcast %1 : vector<1x128xi32> to vector<8x128xi32>
    %6 = arith.cmpi eq, %5, %4 : vector<8x128xi32>
    %7 = arith.extui %6 : vector<8x128xi1> to vector<8x128xi32>
    %8 = arith.sitofp %7 : vector<8x128xi32> to vector<8x128xf32>
    %cst = arith.constant dense<0.000000e+00> : vector<8xf32>
    %9 = vector.multi_reduction <add>, %8, %cst [1] : vector<8x128xf32> to vector<8xf32>
    %10 = vector.shape_cast %9 : vector<8xf32> to vector<8x1xf32>
    %cst_1 = arith.constant 1.000000e+00 : f32
    %11 = vector.broadcast %cst_1 : f32 to vector<8x1xf32>
    %12 = arith.maximumf %10, %11 : vector<8x1xf32>
    %13 = tpu.reciprocal %12 {approx = true} : vector<8x1xf32> -> vector<8x1xf32>
    %14 = vector.broadcast %13 : vector<8x1xf32> to vector<8x128xf32>
    %15 = arith.mulf %8, %14 : vector<8x128xf32>
    %c0_2 = arith.constant 0 : index
    %c0_3 = arith.constant 0 : index
    %16 = vector.load %arg2[%c0_2, %c0_3] : memref<128x1xi32, #tpu.memory_space<vmem>>, vector<128x1xi32>
    %17 = tpu.iota {dimensions = array<i32: 1>} : vector<128x128xi32>
    %18 = vector.broadcast %16 : vector<128x1xi32> to vector<128x128xi32>
    %19 = arith.cmpi eq, %18, %17 : vector<128x128xi32>
    %20 = arith.extui %19 : vector<128x128xi1> to vector<128x128xi32>
    %21 = arith.sitofp %20 : vector<128x128xi32> to vector<128x128xf32>
    %cst_4 = arith.constant dense<0.000000e+00> : vector<8x128xf32>
    %22 = tpu.matmul %15, %21, %cst_4 {dimension_numbers = #tpu.dot_dimension_numbers<[1], [0], [0], [1], [0, 0, 1, 1], [], []>} : vector<8x128xf32>, vector<128x128xf32>, vector<8x128xf32> -> vector<8x128xf32>
    %c0_5 = arith.constant 0 : index
    %c0_6 = arith.constant 0 : index
    %23 = vector.load %arg3[%c0_5, %c0_6] : memref<128x32xf32, #tpu.memory_space<vmem>>, vector<128x32xf32>
    %cst_7 = arith.constant dense<0.000000e+00> : vector<8x32xf32>
    %24 = tpu.matmul %22, %23, %cst_7 {dimension_numbers = #tpu.dot_dimension_numbers<[1], [0], [0], [1], [0, 0, 1, 1], [], []>} : vector<8x128xf32>, vector<128x32xf32>, vector<8x32xf32> -> vector<8x32xf32>
    %c0_8 = arith.constant 0 : index
    %c0_9 = arith.constant 0 : index
    %25 = vector.load %arg4[%c0_8, %c0_9] : memref<32x128xf32, #tpu.memory_space<vmem>>, vector<32x128xf32>
    %cst_10 = arith.constant dense<0.000000e+00> : vector<8x128xf32>
    %26 = tpu.matmul %24, %25, %cst_10 {dimension_numbers = #tpu.dot_dimension_numbers<[1], [0], [0], [1], [0, 0, 1, 1], [], []>} : vector<8x32xf32>, vector<32x128xf32>, vector<8x128xf32> -> vector<8x128xf32>
    %c0_11 = arith.constant 0 : index
    %c0_12 = arith.constant 0 : index
    %27 = vector.load %arg5[%c0_11, %c0_12] : memref<1x128xf32, #tpu.memory_space<vmem>>, vector<1x128xf32>
    %28 = vector.broadcast %27 : vector<1x128xf32> to vector<8x128xf32>
    %29 = arith.addf %26, %28 : vector<8x128xf32>
    %c0_13 = arith.constant 0 : index
    %c0_14 = arith.constant 0 : index
    %30 = vector.load %arg6[%c0_13, %c0_14] : memref<8x128xf32, #tpu.memory_space<vmem>>, vector<8x128xf32>
    tpu.vector_store %arg6[%c0_13, %c0_14], %29 {strides = array<i32>} : memref<8x128xf32, #tpu.memory_space<vmem>>, vector<8x128xf32>,
    return
  }
  func.func @transform_0(%arg0: i32) -> (i32, i32) {
    %c0_i32 = arith.constant 0 : i32
    %c0_i32_0 = arith.constant 0 : i32
    %c0_i32_1 = arith.constant 0 : i32
    return %c0_i32, %c0_i32_0 : i32, i32
  }
  func.func @transform_1(%arg0: i32) -> (i32, i32) {
    %c0_i32 = arith.constant 0 : i32
    %c0_i32_0 = arith.constant 0 : i32
    %c0_i32_1 = arith.constant 0 : i32
    return %c0_i32, %c0_i32_0 : i32, i32
  }
  func.func @transform_2(%arg0: i32) -> (i32, i32) {
    %c0_i32 = arith.constant 0 : i32
    %c0_i32_0 = arith.constant 0 : i32
    %c0_i32_1 = arith.constant 0 : i32
    return %c0_i32, %c0_i32_0 : i32, i32
  }
  func.func @transform_3(%arg0: i32) -> (i32, i32) {
    %c0_i32 = arith.constant 0 : i32
    %c0_i32_0 = arith.constant 0 : i32
    %c0_i32_1 = arith.constant 0 : i32
    return %c0_i32, %c0_i32_0 : i32, i32
  }
  func.func @transform_4(%arg0: i32) -> (i32, i32) {
    %c0_i32 = arith.constant 0 : i32
    %c0_i32_0 = arith.constant 0 : i32
    %c0_i32_1 = arith.constant 0 : i32
    return %c0_i32, %c0_i32_0 : i32, i32
  }
  func.func @transform_5(%arg0: i32) -> (i32, i32) {
    %c0_i32 = arith.constant 0 : i32
    %c0_i32_0 = arith.constant 0 : i32
    return %arg0, %c0_i32 : i32, i32
  }
}

</mosaic_0001>

<llo_original>
// kernel: tpu_custom_call.1
$region0: #{tpu_custom_call.1}
  #allocation0 [shape = 'u32[]', space=smem, size = 0x4, offset = 0x4, fixed_abs, tag = 'smem constant byte address 0x4 - core index']
  #allocation1 [shape = 'u32[144,128]{1,0:T(1,128)}', space=vmem, size = 0x12000, scoped, tag = 'internal scratch']
  %s0 = inlined_call_operand.vmem [shape: s32[1,128], index: 0, kind: input, shape index: {}]
  %s1 = inlined_call_operand.vmem [shape: s32[128,1], index: 1, kind: input, shape index: {}]
  %s2 = inlined_call_operand.vmem [shape: f32[128,32], index: 2, kind: input, shape index: {}]
  %s3 = inlined_call_operand.vmem [shape: f32[32,128], index: 3, kind: input, shape index: {}]
  %s4 = inlined_call_operand.vmem [shape: f32[1,128], index: 4, kind: input, shape index: {}]
  %s5 = inlined_call_operand.hbm [shape: f32[8,128], index: 5, kind: output, shape index: {}]
  %s6 = sld [smem:[#allocation0]]
  $region30: #{tpu_custom_call.1} parent=0
    _
  %s8 = ssub.s32 1, %s6
  %s9 = scalar_select 0, %s8, %s6
  $region1: #{tpu_custom_call.1} parent=0
    #allocation2 [shape = 'u8[4096]{0}', space=vmem, size = 0x1000, scoped, tag = 'output window, operand 0, single buffered']
    #allocation3 [shape = 's32[1]{0}', space=sflag, size = 0x4, scoped, tag = 'scoped memory for tpu_custom_call.1']
    %10 = vsyncpa [#allocation3], 0
    // Predicated region
    $region2: #{tpu_custom_call.1} parent=1 // pred_check
      _
    $region3: #{tpu_custom_call.1} parent=1 // pred_check_branch
      %12 = sbr.rel (0) target = $region5
    $region4: #{tpu_custom_call.1} parent=1 // pred_region
      _
    $region5: #{tpu_custom_call.1} parent=1 // pred_fallthru
      _
    // Predicated region
    $region6: #{tpu_custom_call.1} parent=1 // pred_check
      _
    $region7: #{tpu_custom_call.1} parent=1 // pred_check_branch
      %14 = sbr.rel (0) target = $region9
    $region8: #{tpu_custom_call.1} parent=1 // pred_region
      _
    $region9: #{tpu_custom_call.1} parent=1 // pred_fallthru
      _
    // Predicated region
    $region10: #{tpu_custom_call.1} parent=1 // pred_check
      _
    $region11: #{tpu_custom_call.1} parent=1 // pred_check_branch
      %16 = sbr.rel (0) target = $region13
    $region12: #{tpu_custom_call.1} parent=1 // pred_region
      _
    $region13: #{tpu_custom_call.1} parent=1 // pred_fallthru
      _
    // Predicated region
    $region14: #{tpu_custom_call.1} parent=1 // pred_check
      _
    $region15: #{tpu_custom_call.1} parent=1 // pred_check_branch
      %18 = sbr.rel (0) target = $region17
    $region16: #{tpu_custom_call.1} parent=1 // pred_region
      _
    $region17: #{tpu_custom_call.1} parent=1 // pred_fallthru
      _
    // Predicated region
    $region18: #{tpu_custom_call.1} parent=1 // pred_check
      _
    $region19: #{tpu_custom_call.1} parent=1 // pred_check_branch
      %20 = sbr.rel (0) target = $region21
    $region20: #{tpu_custom_call.1} parent=1 // pred_region
      _
    $region21: #{tpu_custom_call.1} parent=1 // pred_fallthru
      _
    %s21 = smul.u32 0, 8
    %v22 = vld [vmem:[%s0] sm:$0x1]
    %v23 = vlaneseq
    %v24 = vshrl.u32 %v23, 7
    %v25 = vstv %s21
    %v26 = vadd.s32 %v24, %v25
    %v27 = vlaneseq
    %v28 = vshrl.u32 %v27, 7
    %v29 = vsub.s32 0, %v28
    %v30 = vrot.slane %v22, %v29
    %vm31 = vcmp.eq.s32.totalorder %v30, %v26
    %v32 = vsel %vm31, 1, 0
    %v33 = vcvt.s32.f32 %v32
    %34 = vadd.xlane.f32.xlu0 %v33
    %v35 = vpop.xlane.xlu0 %34
    %v36 = vmax.f32 %v35, 1.0
    %v37 = vrcp.pop %v36
    %v38 = vmul.f32 %v33, %v37
    %v39 = vld [vmem:[%s1] sm:$0xff]
    %v40 = vld [vmem:[%s1 + $0x8] sm:$0xff]
    %v41 = vld [vmem:[%s1 + $0x10] sm:$0xff]
    %v42 = vld [vmem:[%s1 + $0x18] sm:$0xff]
    %v43 = vld [vmem:[%s1 + $0x20] sm:$0xff]
    %v44 = vld [vmem:[%s1 + $0x28] sm:$0xff]
    %v45 = vld [vmem:[%s1 + $0x30] sm:$0xff]
    %v46 = vld [vmem:[%s1 + $0x38] sm:$0xff]
    %v47 = vld [vmem:[%s1 + $0x40] sm:$0xff]
    %v48 = vld [vmem:[%s1 + $0x48] sm:$0xff]
    %v49 = vld [vmem:[%s1 + $0x50] sm:$0xff]
    %v50 = vld [vmem:[%s1 + $0x58] sm:$0xff]
    %v51 = vld [vmem:[%s1 + $0x60] sm:$0xff]
    %v52 = vld [vmem:[%s1 + $0x68] sm:$0xff]
    %v53 = vld [vmem:[%s1 + $0x70] sm:$0xff]
    %v54 = vld [vmem:[%s1 + $0x78] sm:$0xff]
    %v55 = vlaneseq
    %v56 = vand.u32 %v55, 127
    %57 = vset.pattern.permute.xlu0 0
    %58 = vperm.xlu0 %57, %v39
    %v59 = vpop.permute.xlu0 %58
    %60 = vset.pattern.permute.xlu0 0
    %61 = vperm.xlu0 %60, %v40
    %v62 = vpop.permute.xlu0 %61
    %63 = vset.pattern.permute.xlu0 0
    %64 = vperm.xlu0 %63, %v41
    %v65 = vpop.permute.xlu0 %64
    %66 = vset.pattern.permute.xlu0 0
    %67 = vperm.xlu0 %66, %v42
    %v68 = vpop.permute.xlu0 %67
    %69 = vset.pattern.permute.xlu0 0
    %70 = vperm.xlu0 %69, %v43
    %v71 = vpop.permute.xlu0 %70
    %72 = vset.pattern.permute.xlu0 0
    %73 = vperm.xlu0 %72, %v44
    %v74 = vpop.permute.xlu0 %73
    %75 = vset.pattern.permute.xlu0 0
    %76 = vperm.xlu0 %75, %v45
    %v77 = vpop.permute.xlu0 %76
    %78 = vset.pattern.permute.xlu0 0
    %79 = vperm.xlu0 %78, %v46
    %v80 = vpop.permute.xlu0 %79
    %81 = vset.pattern.permute.xlu0 0
    %82 = vperm.xlu0 %81, %v47
    %v83 = vpop.permute.xlu0 %82
    %84 = vset.pattern.permute.xlu0 0
    %85 = vperm.xlu0 %84, %v48
    %v86 = vpop.permute.xlu0 %85
    %87 = vset.pattern.permute.xlu0 0
    %88 = vperm.xlu0 %87, %v49
    %v89 = vpop.permute.xlu0 %88
    %90 = vset.pattern.permute.xlu0 0
    %91 = vperm.xlu0 %90, %v50
    %v92 = vpop.permute.xlu0 %91
    %93 = vset.pattern.permute.xlu0 0
    %94 = vperm.xlu0 %93, %v51
    %v95 = vpop.permute.xlu0 %94
    %96 = vset.pattern.permute.xlu0 0
    %97 = vperm.xlu0 %96, %v52
    %v98 = vpop.permute.xlu0 %97
    %99 = vset.pattern.permute.xlu0 0
    %100 = vperm.xlu0 %99, %v53
    %v101 = vpop.permute.xlu0 %100
    %102 = vset.pattern.permute.xlu0 0
    %103 = vperm.xlu0 %102, %v54
    %v104 = vpop.permute.xlu0 %103
    %vm105 = vcmp.eq.s32.totalorder %v59, %v56
    %vm106 = vcmp.eq.s32.totalorder %v62, %v56
    %vm107 = vcmp.eq.s32.totalorder %v65, %v56
    %vm108 = vcmp.eq.s32.totalorder %v68, %v56
    %vm109 = vcmp.eq.s32.totalorder %v71, %v56
    %vm110 = vcmp.eq.s32.totalorder %v74, %v56
    %vm111 = vcmp.eq.s32.totalorder %v77, %v56
    %vm112 = vcmp.eq.s32.totalorder %v80, %v56
    %vm113 = vcmp.eq.s32.totalorder %v83, %v56
    %vm114 = vcmp.eq.s32.totalorder %v86, %v56
    %vm115 = vcmp.eq.s32.totalorder %v89, %v56
    %vm116 = vcmp.eq.s32.totalorder %v92, %v56
    %vm117 = vcmp.eq.s32.totalorder %v95, %v56
    %vm118 = vcmp.eq.s32.totalorder %v98, %v56
    %vm119 = vcmp.eq.s32.totalorder %v101, %v56
    %vm120 = vcmp.eq.s32.totalorder %v104, %v56
    %v121 = vsel %vm105, 1, 0
    %v122 = vsel %vm106, 1, 0
    %v123 = vsel %vm107, 1, 0
    %v124 = vsel %vm108, 1, 0
    %v125 = vsel %vm109, 1, 0
    %v126 = vsel %vm110, 1, 0
    %v127 = vsel %vm111, 1, 0
    %v128 = vsel %vm112, 1, 0
    %v129 = vsel %vm113, 1, 0
    %v130 = vsel %vm114, 1, 0
    %v131 = vsel %vm115, 1, 0
    %v132 = vsel %vm116, 1, 0
    %v133 = vsel %vm117, 1, 0
    %v134 = vsel %vm118, 1, 0
    %v135 = vsel %vm119, 1, 0
    %v136 = vsel %vm120, 1, 0
    %v137 = vcvt.s32.f32 %v121
    %v138 = vcvt.s32.f32 %v122
    %v139 = vcvt.s32.f32 %v123
    %v140 = vcvt.s32.f32 %v124
    %v141 = vcvt.s32.f32 %v125
    %v142 = vcvt.s32.f32 %v126
    %v143 = vcvt.s32.f32 %v127
    %v144 = vcvt.s32.f32 %v128
    %v145 = vcvt.s32.f32 %v129
    %v146 = vcvt.s32.f32 %v130
    %v147 = vcvt.s32.f32 %v131
    %v148 = vcvt.s32.f32 %v132
    %v149 = vcvt.s32.f32 %v133
    %v150 = vcvt.s32.f32 %v134
    %v151 = vcvt.s32.f32 %v135
    %v152 = vcvt.s32.f32 %v136
    %153 = vmatprep.subr.mxu0 0.0
    %154 = vmatpush1.msra.mxu0 %v137
    %155 = vmatprep.subr.mxu0 0.0
    %156 = vmatpush1.msra.mxu0 %v138
    %157 = vmatprep.subr.mxu0 0.0
    %158 = vmatpush1.msra.mxu0 %v139
    %159 = vmatprep.subr.mxu0 0.0
    %160 = vmatpush1.msra.mxu0 %v140
    %161 = vmatprep.subr.mxu0 0.0
    %162 = vmatpush1.msra.mxu0 %v141
    %163 = vmatprep.subr.mxu0 0.0
    %164 = vmatpush1.msra.mxu0 %v142
    %165 = vmatprep.subr.mxu0 0.0
    %166 = vmatpush1.msra.mxu0 %v143
    %167 = vmatprep.subr.mxu0 0.0
    %168 = vmatpush1.msra.mxu0 %v144
    %169 = vmatprep.subr.mxu0 0.0
    %170 = vmatpush1.msra.mxu0 %v145
    %171 = vmatprep.subr.mxu0 0.0
    %172 = vmatpush1.msra.mxu0 %v146
    %173 = vmatprep.subr.mxu0 0.0
    %174 = vmatpush1.msra.mxu0 %v147
    %175 = vmatprep.subr.mxu0 0.0
    %176 = vmatpush1.msra.mxu0 %v148
    %177 = vmatprep.subr.mxu0 0.0
    %178 = vmatpush1.msra.mxu0 %v149
    %179 = vmatprep.subr.mxu0 0.0
    %180 = vmatpush1.msra.mxu0 %v150
    %181 = vmatprep.subr.mxu0 0.0
    %182 = vmatpush1.msra.mxu0 %v151
    %183 = vmatprep.subr.mxu0 0.0
    %184 = vmatpush1.msra.mxu0 %v152
    %185 = vmatprep.subr.mxu0 0.0
    %186 = vmatpush1.msra.mxu0 0.0
    %187 = vmatprep.subr.mxu0 0.0
    %188 = vmatpush1.msra.mxu0 0.0
    %189 = vmatprep.subr.mxu0 0.0
    %190 = vmatpush1.msra.mxu0 0.0
    %191 = vmatprep.subr.mxu0 0.0
    %192 = vmatpush1.msra.mxu0 0.0
    %193 = vmatprep.subr.mxu0 0.0
    %194 = vmatpush1.msra.mxu0 0.0
    %195 = vmatprep.subr.mxu0 0.0
    %196 = vmatpush1.msra.mxu0 0.0
    %197 = vmatprep.subr.mxu0 0.0
    %198 = vmatpush1.msra.mxu0 0.0
    %199 = vmatprep.subr.mxu0 0.0
    %200 = vmatpush1.msra.mxu0 0.0
    %201 = vmatprep.subr.mxu0 0.0
    %202 = vmatpush1.msra.mxu0 0.0
    %203 = vmatprep.subr.mxu0 0.0
    %204 = vmatpush1.msra.mxu0 0.0
    %205 = vmatprep.subr.mxu0 0.0
    %206 = vmatpush1.msra.mxu0 0.0
    %207 = vmatprep.subr.mxu0 0.0
    %208 = vmatpush1.msra.mxu0 0.0
    %209 = vmatprep.subr.mxu0 0.0
    %210 = vmatpush1.msra.mxu0 0.0
    %211 = vmatprep.subr.mxu0 0.0
    %212 = vmatpush1.msra.mxu0 0.0
    %213 = vmatprep.subr.mxu0 0.0
    %214 = vmatpush1.msra.mxu0 0.0
    %215 = vmatprep.subr.mxu0 0.0
    %216 = vmatpush1.msra.mxu0 0.0
    %217 = vmatprep.mubr.f32.mxu0 0.0
    %218 = vmatmul.mubr.f32.gmra.mrb[0].mxu0 %v38
    %v219 = vpop.f32.mrb[0].mxu0
    %v220 = vadd.f32 0.0, %v219
    %v221 = vpop.f32.mrb[0].mxu0
    %222 = vdwg.mxu0
    %v223 = vld [vmem:[%s2] sm:$0xff]
    %v224 = vld [vmem:[%s2 + $0x8] sm:$0xff]
    %v225 = vld [vmem:[%s2 + $0x10] sm:$0xff]
    %v226 = vld [vmem:[%s2 + $0x18] sm:$0xff]
    %v227 = vld [vmem:[%s2 + $0x20] sm:$0xff]
    %v228 = vld [vmem:[%s2 + $0x28] sm:$0xff]
    %v229 = vld [vmem:[%s2 + $0x30] sm:$0xff]
    %v230 = vld [vmem:[%s2 + $0x38] sm:$0xff]
    %v231 = vld [vmem:[%s2 + $0x40] sm:$0xff]
    %v232 = vld [vmem:[%s2 + $0x48] sm:$0xff]
    %v233 = vld [vmem:[%s2 + $0x50] sm:$0xff]
    %v234 = vld [vmem:[%s2 + $0x58] sm:$0xff]
    %v235 = vld [vmem:[%s2 + $0x60] sm:$0xff]
    %v236 = vld [vmem:[%s2 + $0x68] sm:$0xff]
    %v237 = vld [vmem:[%s2 + $0x70] sm:$0xff]
    %v238 = vld [vmem:[%s2 + $0x78] sm:$0xff]
    %239 = vmatprep.subr.mxu0 0.0
    %240 = vmatpush1.msra.mxu0 %v223
    %241 = vmatprep.subr.mxu0 0.0
    %242 = vmatpush1.msra.mxu0 %v224
    %243 = vmatprep.subr.mxu0 0.0
    %244 = vmatpush1.msra.mxu0 %v225
    %245 = vmatprep.subr.mxu0 0.0
    %246 = vmatpush1.msra.mxu0 %v226
    %247 = vmatprep.subr.mxu0 0.0
    %248 = vmatpush1.msra.mxu0 %v227
    %249 = vmatprep.subr.mxu0 0.0
    %250 = vmatpush1.msra.mxu0 %v228
    %251 = vmatprep.subr.mxu0 0.0
    %252 = vmatpush1.msra.mxu0 %v229
    %253 = vmatprep.subr.mxu0 0.0
    %254 = vmatpush1.msra.mxu0 %v230
    %255 = vmatprep.subr.mxu0 0.0
    %256 = vmatpush1.msra.mxu0 %v231
    %257 = vmatprep.subr.mxu0 0.0
    %258 = vmatpush1.msra.mxu0 %v232
    %259 = vmatprep.subr.mxu0 0.0
    %260 = vmatpush1.msra.mxu0 %v233
    %261 = vmatprep.subr.mxu0 0.0
    %262 = vmatpush1.msra.mxu0 %v234
    %263 = vmatprep.subr.mxu0 0.0
    %264 = vmatpush1.msra.mxu0 %v235
    %265 = vmatprep.subr.mxu0 0.0
    %266 = vmatpush1.msra.mxu0 %v236
    %267 = vmatprep.subr.mxu0 0.0
    %268 = vmatpush1.msra.mxu0 %v237
    %269 = vmatprep.subr.mxu0 0.0
    %270 = vmatpush1.msra.mxu0 %v238
    %271 = vmatprep.subr.mxu0 0.0
    %272 = vmatpush1.msra.mxu0 0.0
    %273 = vmatprep.subr.mxu0 0.0
    %274 = vmatpush1.msra.mxu0 0.0
    %275 = vmatprep.subr.mxu0 0.0
    %276 = vmatpush1.msra.mxu0 0.0
    %277 = vmatprep.subr.mxu0 0.0
    %278 = vmatpush1.msra.mxu0 0.0
    %279 = vmatprep.subr.mxu0 0.0
    %280 = vmatpush1.msra.mxu0 0.0
    %281 = vmatprep.subr.mxu0 0.0
    %282 = vmatpush1.msra.mxu0 0.0
    %283 = vmatprep.subr.mxu0 0.0
    %284 = vmatpush1.msra.mxu0 0.0
    %285 = vmatprep.subr.mxu0 0.0
    %286 = vmatpush1.msra.mxu0 0.0
    %287 = vmatprep.subr.mxu0 0.0
    %288 = vmatpush1.msra.mxu0 0.0
    %289 = vmatprep.subr.mxu0 0.0
    %290 = vmatpush1.msra.mxu0 0.0
    %291 = vmatprep.subr.mxu0 0.0
    %292 = vmatpush1.msra.mxu0 0.0
    %293 = vmatprep.subr.mxu0 0.0
    %294 = vmatpush1.msra.mxu0 0.0
    %295 = vmatprep.subr.mxu0 0.0
    %296 = vmatpush1.msra.mxu0 0.0
    %297 = vmatprep.subr.mxu0 0.0
    %298 = vmatpush1.msra.mxu0 0.0
    %299 = vmatprep.subr.mxu0 0.0
    %300 = vmatpush1.msra.mxu0 0.0
    %301 = vmatprep.subr.mxu0 0.0
    %302 = vmatpush1.msra.mxu0 0.0
    %303 = vmatprep.mubr.f32.mxu0 0.0
    %304 = vmatmul.mubr.f32.gmra.mrb[0].mxu0 %v220
    %v305 = vpop.f32.mrb[0].mxu0
    %v306 = vadd.f32 0.0, %v305
    %v307 = vpop.f32.mrb[0].mxu0
    %308 = vdwg.mxu0
    %v309 = vld [vmem:[%s3] sm:$0xff]
    %v310 = vld [vmem:[%s3 + $0x8] sm:$0xff]
    %v311 = vld [vmem:[%s3 + $0x10] sm:$0xff]
    %v312 = vld [vmem:[%s3 + $0x18] sm:$0xff]
    %v313 = vld [vmem:[%s4] sm:$0x1]
    %v315 = vlaneseq
    %v316 = vshrl.u32 %v315, 7
    %v317 = vsub.s32 0, %v316
    %v318 = vrot.slane %v313, %v317
    %vm320 = vcmask 261120
    %v322 = vsel %vm320, %v306, 0
    %324 = vmatprep.subr.mxu0 0.0
    %325 = vmatpush1.msra.mxu0 %v309
    %326 = vmatprep.subr.mxu0 0.0
    %327 = vmatpush1.msra.mxu0 %v310
    %328 = vmatprep.subr.mxu0 0.0
    %329 = vmatpush1.msra.mxu0 %v311
    %330 = vmatprep.subr.mxu0 0.0
    %331 = vmatpush1.msra.mxu0 %v312
    %332 = vmatprep.subr.mxu0 0.0
    %333 = vmatpush1.msra.mxu0 0.0
    %334 = vmatprep.subr.mxu0 0.0
    %335 = vmatpush1.msra.mxu0 0.0
    %336 = vmatprep.subr.mxu0 0.0
    %337 = vmatpush1.msra.mxu0 0.0
    %338 = vmatprep.subr.mxu0 0.0
    %339 = vmatpush1.msra.mxu0 0.0
    %340 = vmatprep.subr.mxu0 0.0
    %341 = vmatpush1.msra.mxu0 0.0
    %342 = vmatprep.subr.mxu0 0.0
    %343 = vmatpush1.msra.mxu0 0.0
    %344 = vmatprep.subr.mxu0 0.0
    %345 = vmatpush1.msra.mxu0 0.0
    %346 = vmatprep.subr.mxu0 0.0
    %347 = vmatpush1.msra.mxu0 0.0
    %348 = vmatprep.subr.mxu0 0.0
    %349 = vmatpush1.msra.mxu0 0.0
    %350 = vmatprep.subr.mxu0 0.0
    %351 = vmatpush1.msra.mxu0 0.0
    %352 = vmatprep.subr.mxu0 0.0
    %353 = vmatpush1.msra.mxu0 0.0
    %354 = vmatprep.subr.mxu0 0.0
    %355 = vmatpush1.msra.mxu0 0.0
    %356 = vmatprep.subr.mxu0 0.0
    %357 = vmatpush1.msra.mxu0 0.0
    %358 = vmatprep.subr.mxu0 0.0
    %359 = vmatpush1.msra.mxu0 0.0
    %360 = vmatprep.subr.mxu0 0.0
    %361 = vmatpush1.msra.mxu0 0.0
    %362 = vmatprep.subr.mxu0 0.0
    %363 = vmatpush1.msra.mxu0 0.0
    %364 = vmatprep.subr.mxu0 0.0
    %365 = vmatpush1.msra.mxu0 0.0
    %366 = vmatprep.subr.mxu0 0.0
    %367 = vmatpush1.msra.mxu0 0.0
    %368 = vmatprep.subr.mxu0 0.0
    %369 = vmatpush1.msra.mxu0 0.0
    %370 = vmatprep.subr.mxu0 0.0
    %371 = vmatpush1.msra.mxu0 0.0
    %372 = vmatprep.subr.mxu0 0.0
    %373 = vmatpush1.msra.mxu0 0.0
    %374 = vmatprep.subr.mxu0 0.0
    %375 = vmatpush1.msra.mxu0 0.0
    %376 = vmatprep.subr.mxu0 0.0
    %377 = vmatpush1.msra.mxu0 0.0
    %378 = vmatprep.subr.mxu0 0.0
    %379 = vmatpush1.msra.mxu0 0.0
    %380 = vmatprep.subr.mxu0 0.0
    %381 = vmatpush1.msra.mxu0 0.0
    %382 = vmatprep.subr.mxu0 0.0
    %383 = vmatpush1.msra.mxu0 0.0
    %384 = vmatprep.subr.mxu0 0.0
    %385 = vmatpush1.msra.mxu0 0.0
    %386 = vmatprep.subr.mxu0 0.0
    %387 = vmatpush1.msra.mxu0 0.0
    %388 = vmatprep.mubr.f32.mxu0 0.0
    %389 = vmatmul.mubr.f32.gmra.mrb[0].mxu0 %v322
    %v390 = vpop.f32.mrb[0].mxu0
    %v391 = vadd.f32 %v318, %v390
    %v392 = vpop.f32.mrb[0].mxu0
    %393 = vdwg.mxu0
    %394 = vst [vmem:[#allocation2] sm:$0xff] %v391
    // Predicated region
    $region22: #{tpu_custom_call.1} parent=1 // pred_check
      _
    $region23: #{tpu_custom_call.1} parent=1 // pred_check_branch
      %396 = sbr.rel (0) target = $region25
    $region24: #{tpu_custom_call.1} parent=1 // pred_region
      %s398 = ssub.s32 128, 128
      %399 = vsyncadd [#allocation3], %s398
      %s401 = sshll.u32 [#allocation2], 4
      %s402 = int_to_ptr.vmem [resolvable:$true] %s401
      %404 = dma.vmem_to_hbm [thread:$0]  %s402, 128, %s5, [#allocation3]
    $region25: #{tpu_custom_call.1} parent=1 // pred_fallthru
      _
    // Predicated region
    $region26: #{tpu_custom_call.1} parent=1 // pred_check
      _
    $region27: #{tpu_custom_call.1} parent=1 // pred_check_branch
      %406 = sbr.rel (0) target = $region29
    $region28: #{tpu_custom_call.1} parent=1 // pred_region
      %407 = dma.done [#allocation3], 128
    $region29: #{tpu_custom_call.1} parent=1 // pred_fallthru
      _
    %408 = vsyncpa [#allocation3], 1

</llo_original>
